<compile_context>
chip_gen: v7x
topology: tpu7x:2x2x1
jax: 0.10.0
libtpu: 0.0.40
codegen_flags: <defaults>
</compile_context>

<pallas_src>
import functools

import jax
import jax.numpy as jnp
from jax.experimental import pallas as pl
from jax.experimental.pallas import tpu as pltpu


# ---------------------------------------------------------------------------
# Fused kernel: conv-as-one-matmul + fire + k-winner (kwta=1, radius=0)
# ---------------------------------------------------------------------------
def _snn_fused_kernel(w_ref, patch_ref,               # inputs
                      pot_ref, dec_ref,               # outputs
                      *, T, N_pad, F, F_pad,
                      features_per_class, number_of_classes, threshold):
    # --- convolution: ONE batched MXU matmul (F_pad, K_pad) @ (K_pad, T*N_pad)
    p = jnp.dot(w_ref[...], patch_ref[...], preferred_element_type=jnp.float32)

    # --- single unrolled per-t pass: fire + store + spike counts + first-spike
    counts = jnp.zeros((F_pad, N_pad), jnp.float32)   # spikes summed over time
    values = jnp.zeros((F_pad, N_pad), jnp.float32)   # potential at first spike
    thr = jnp.float32(threshold)
    for t in range(T):
        p_t = p[:, t * N_pad:(t + 1) * N_pad]
        s_bool = p_t > thr                             # fire (strict >, as F.threshold)
        s_t = s_bool.astype(jnp.float32)
        pot_ref[t * F_pad:(t + 1) * F_pad, :] = p_t * s_t   # thresholded potentials
        newly = jnp.logical_and(s_bool, counts == 0.0)       # first spike here & now
        values = jnp.where(newly, p_t, values)
        counts = counts + s_t

    # --- get_k_winners(potentials=p, kwta=1, inhibition_radius=0, spikes=s)
    # truncated_pot_t = s_t * values;  v = max(truncated_pot) * T
    # total = sum_t (truncated_pot_t + s_t * v) = counts * (values + v)
    tp_max = jnp.max(values)                # values>0 only where a spike occurred
    v = tp_max * jnp.float32(T)
    total = counts * (values + v)

    # winner = first max in flattened (F, Ho, Wo) order; decision_map is
    # nondecreasing in f, so the decision is the min class among tied maxima.
    row_max = jnp.max(total, axis=1, keepdims=True)   # (F_pad, 1)
    max_val = jnp.max(row_max)

    big = jnp.float32(1e30)
    fidx = jax.lax.broadcasted_iota(jnp.int32, (F_pad, 1), 0)
    cls_col = jnp.zeros((F_pad, 1), jnp.float32)       # decision_map[f] = f // fpc
    for c in range(1, number_of_classes):
        cls_col = cls_col + (fidx >= c * features_per_class).astype(jnp.float32)
    cls_col = jnp.where(fidx < F, cls_col, big)        # padded feature rows never win

    cls_win = jnp.min(jnp.where(row_max == max_val, cls_col, big))
    decision = jnp.where(max_val != 0.0, cls_win, jnp.float32(-1.0))
    dec_ref[0, 0] = decision.astype(jnp.int32)


# ---------------------------------------------------------------------------
# Wrapper: pool + im2col + padding glue in XLA, all compute in one Pallas call
# ---------------------------------------------------------------------------
def snn_forward(x, weight, *, features_per_class, number_of_classes,
                threshold=20.0):
    x = x.astype(jnp.float32)
    weight = weight.astype(jnp.float32)
    T, C, H, W = x.shape
    F = features_per_class * number_of_classes
    Ho, Wo = H - 2, W - 2
    N = Ho * Wo
    K = C * 9

    F_pad = max(8, ((F + 7) // 8) * 8)            # sublane-dense feature rows
    K_pad = ((K + 7) // 8) * 8                    # contraction dim, sublane-dense
    N_pad = ((N + 127) // 128) * 128              # lane-dense spatial columns

    # ---- 3x3 / stride 1 / pad 1 max pool (spikes >= 0, so zero-pad is exact) ----
    xp = jnp.pad(x, ((0, 0), (0, 0), (1, 1), (1, 1)))
    pooled = xp[:, :, 0:H, 0:W]
    for di in range(3):
        for dj in range(3):
            if di == 0 and dj == 0:
                continue
            pooled = jnp.maximum(pooled, xp[:, :, di:di + H, dj:dj + W])

    # ---- im2col built directly in (K, T, Ho, Wo) order (no transpose copy);
    #      row order k = c*9 + di*3 + dj matches weight.reshape(F, K) ----
    patches = jnp.stack(
        [pooled[:, c, di:di + Ho, dj:dj + Wo]
         for c in range(C) for di in range(3) for dj in range(3)],
        axis=0,                                   # (K, T, Ho, Wo)
    ).reshape(K, T, N)
    patches = jnp.pad(patches, ((0, K_pad - K), (0, 0), (0, N_pad - N)))
    patches2d = patches.reshape(K_pad, T * N_pad)

    w2d = jnp.pad(weight.reshape(F, K), ((0, F_pad - F), (0, K_pad - K)))

    # ---- single fused Pallas launch ----
    pot2d, dec = pl.pallas_call(
        functools.partial(_snn_fused_kernel, T=T, N_pad=N_pad, F=F, F_pad=F_pad,
                          features_per_class=features_per_class,
                          number_of_classes=number_of_classes,
                          threshold=float(threshold)),
        out_shape=(
            jax.ShapeDtypeStruct((T * F_pad, N_pad), jnp.float32),  # thresholded pot (T-major)
            jax.ShapeDtypeStruct((1, 1), jnp.int32),                # decision (-1 if none)
        ),
        grid=(1,),
        in_specs=[
            pl.BlockSpec((F_pad, K_pad), lambda i: (0, 0)),
            pl.BlockSpec((K_pad, T * N_pad), lambda i: (0, 0)),
        ],
        out_specs=(
            pl.BlockSpec((T * F_pad, N_pad), lambda i: (0, 0)),
            pl.BlockSpec(memory_space=pltpu.MemorySpace.SMEM),
        ),
        compiler_params=pltpu.CompilerParams(
            dimension_semantics=("arbitrary",)),
    )(w2d, patches2d)

    # ---- contiguous crops only (no transpose copies) ----
    pot = pot2d.reshape(T, F_pad, N_pad)[:, :F, :N].reshape(T, F, Ho, Wo)
    spk = (pot > 0).astype(jnp.float32)           # spikes = sign(thresholded pot)
    return dec[0, 0], spk, pot


# TODO(synk): reward()/STDP/anti-STDP weight updates are training-time side
# effects and are not part of forward(); they are not implemented here.

if __name__ == "__main__":
    # SNN(input_channels=4, features_per_class=5, number_of_classes=3)
    T, C, H, W = 8, 4, 16, 16
    features_per_class, number_of_classes = 5, 3
    F = features_per_class * number_of_classes

    key = jax.random.PRNGKey(0)
    k_x, k_w = jax.random.split(key)

    # cumulative binary spike wave (SpykeTorch intensity-to-latency style)
    raw = jax.random.bernoulli(k_x, p=0.3, shape=(T, C, H, W))
    x = (jnp.cumsum(raw.astype(jnp.int32), axis=0) > 0).astype(jnp.float32)

    # Convolution.reset_weight(): weight ~ N(mean=0.8, std=0.05), shape (F, C, 3, 3)
    weight = 0.8 + 0.05 * jax.random.normal(k_w, (F, C, 3, 3), dtype=jnp.float32)

    fwd = jax.jit(functools.partial(
        snn_forward,
        features_per_class=features_per_class,
        number_of_classes=number_of_classes,
        threshold=20.0))

    decision, spikes, potentials = fwd(x, weight)
    jax.block_until_ready((decision, spikes, potentials))
    print("KERNEL_OK")
</pallas_src>

<mosaic_0001>
module attributes {stable_mosaic.version = 11 : i64} {
  func.func @_snn_fused_kernel(%arg0: i32, %arg1: memref<16x40xf32, #tpu.memory_space<vmem>>, %arg2: memref<40x2048xf32, #tpu.memory_space<vmem>>, %arg3: memref<128x256xf32, #tpu.memory_space<vmem>>, %arg4: memref<1x1xi32, #tpu.memory_space<smem>>) attributes {dimension_semantics = [#tpu.dimension_semantics<arbitrary>], iteration_bounds = array<i64: 1>, scalar_prefetch = 0 : i64, scratch_operands = 0 : i64, tpu.core_type = #tpu.core_type<tc>, window_params = [{pipeline_mode = #tpu.pipeline_mode<synchronous>, transform_indices = @transform_0, window_bounds = array<i64: 16, 40>}, {pipeline_mode = #tpu.pipeline_mode<synchronous>, transform_indices = @transform_1, window_bounds = array<i64: 40, 2048>}, {pipeline_mode = #tpu.pipeline_mode<synchronous>, transform_indices = @transform_2, window_bounds = array<i64: 128, 256>}, {transform_indices = @transform_3, window_bounds = array<i64: 1, 1>}]} {
    %c0 = arith.constant 0 : index
    %c0_0 = arith.constant 0 : index
    %0 = vector.load %arg1[%c0, %c0_0] : memref<16x40xf32, #tpu.memory_space<vmem>>, vector<16x40xf32>
    %c0_1 = arith.constant 0 : index
    %c0_2 = arith.constant 0 : index
    %1 = vector.load %arg2[%c0_1, %c0_2] : memref<40x2048xf32, #tpu.memory_space<vmem>>, vector<40x2048xf32>
    %cst = arith.constant dense<0.000000e+00> : vector<16x2048xf32>
    %2 = tpu.matmul %0, %1, %cst {dimension_numbers = #tpu.dot_dimension_numbers<[1], [0], [0], [1], [0, 0, 1, 1], [], []>} : vector<16x40xf32>, vector<40x2048xf32>, vector<16x2048xf32> -> vector<16x2048xf32>
    %cst_3 = arith.constant 0.000000e+00 : f32
    %3 = vector.broadcast %cst_3 : f32 to vector<16x256xf32>
    %cst_4 = arith.constant 0.000000e+00 : f32
    %4 = vector.broadcast %cst_4 : f32 to vector<16x256xf32>
    %5 = vector.extract_strided_slice %2 {offsets = [0, 0], sizes = [16, 256], strides = [1, 1]} : vector<16x2048xf32> to vector<16x256xf32>
    %cst_5 = arith.constant 2.000000e+01 : f32
    %6 = vector.broadcast %cst_5 : f32 to vector<16x256xf32>
    %7 = arith.cmpf ogt, %5, %6 : vector<16x256xf32>
    %8 = arith.extui %7 : vector<16x256xi1> to vector<16x256xi32>
    %9 = arith.sitofp %8 : vector<16x256xi32> to vector<16x256xf32>
    %10 = arith.mulf %5, %9 : vector<16x256xf32>
    %c0_6 = arith.constant 0 : index
    %c0_7 = arith.constant 0 : index
    %11 = vector.load %arg3[%c0_6, %c0_7] : memref<128x256xf32, #tpu.memory_space<vmem>>, vector<16x256xf32>
    tpu.vector_store %arg3[%c0_6, %c0_7], %10 {strides = array<i32>} : memref<128x256xf32, #tpu.memory_space<vmem>>, vector<16x256xf32>,
    %cst_8 = arith.constant 0.000000e+00 : f32
    %12 = vector.broadcast %cst_8 : f32 to vector<16x256xf32>
    %13 = arith.cmpf oeq, %3, %12 : vector<16x256xf32>
    %14 = arith.andi %7, %13 : vector<16x256xi1>
    %15 = arith.select %14, %5, %4 : vector<16x256xi1>, vector<16x256xf32>
    %16 = arith.addf %3, %9 : vector<16x256xf32>
    %17 = vector.extract_strided_slice %2 {offsets = [0, 256], sizes = [16, 256], strides = [1, 1]} : vector<16x2048xf32> to vector<16x256xf32>
    %cst_9 = arith.constant 2.000000e+01 : f32
    %18 = vector.broadcast %cst_9 : f32 to vector<16x256xf32>
    %19 = arith.cmpf ogt, %17, %18 : vector<16x256xf32>
    %20 = arith.extui %19 : vector<16x256xi1> to vector<16x256xi32>
    %21 = arith.sitofp %20 : vector<16x256xi32> to vector<16x256xf32>
    %22 = arith.mulf %17, %21 : vector<16x256xf32>
    %c16 = arith.constant 16 : index
    %c0_10 = arith.constant 0 : index
    %23 = vector.load %arg3[%c16, %c0_10] : memref<128x256xf32, #tpu.memory_space<vmem>>, vector<16x256xf32>
    tpu.vector_store %arg3[%c16, %c0_10], %22 {strides = array<i32>} : memref<128x256xf32, #tpu.memory_space<vmem>>, vector<16x256xf32>,
    %cst_11 = arith.constant 0.000000e+00 : f32
    %24 = vector.broadcast %cst_11 : f32 to vector<16x256xf32>
    %25 = arith.cmpf oeq, %16, %24 : vector<16x256xf32>
    %26 = arith.andi %19, %25 : vector<16x256xi1>
    %27 = arith.select %26, %17, %15 : vector<16x256xi1>, vector<16x256xf32>
    %28 = arith.addf %16, %21 : vector<16x256xf32>
    %29 = vector.extract_strided_slice %2 {offsets = [0, 512], sizes = [16, 256], strides = [1, 1]} : vector<16x2048xf32> to vector<16x256xf32>
    %cst_12 = arith.constant 2.000000e+01 : f32
    %30 = vector.broadcast %cst_12 : f32 to vector<16x256xf32>
    %31 = arith.cmpf ogt, %29, %30 : vector<16x256xf32>
    %32 = arith.extui %31 : vector<16x256xi1> to vector<16x256xi32>
    %33 = arith.sitofp %32 : vector<16x256xi32> to vector<16x256xf32>
    %34 = arith.mulf %29, %33 : vector<16x256xf32>
    %c32 = arith.constant 32 : index
    %c0_13 = arith.constant 0 : index
    %35 = vector.load %arg3[%c32, %c0_13] : memref<128x256xf32, #tpu.memory_space<vmem>>, vector<16x256xf32>
    tpu.vector_store %arg3[%c32, %c0_13], %34 {strides = array<i32>} : memref<128x256xf32, #tpu.memory_space<vmem>>, vector<16x256xf32>,
    %cst_14 = arith.constant 0.000000e+00 : f32
    %36 = vector.broadcast %cst_14 : f32 to vector<16x256xf32>
    %37 = arith.cmpf oeq, %28, %36 : vector<16x256xf32>
    %38 = arith.andi %31, %37 : vector<16x256xi1>
    %39 = arith.select %38, %29, %27 : vector<16x256xi1>, vector<16x256xf32>
    %40 = arith.addf %28, %33 : vector<16x256xf32>
    %41 = vector.extract_strided_slice %2 {offsets = [0, 768], sizes = [16, 256], strides = [1, 1]} : vector<16x2048xf32> to vector<16x256xf32>
    %cst_15 = arith.constant 2.000000e+01 : f32
    %42 = vector.broadcast %cst_15 : f32 to vector<16x256xf32>
    %43 = arith.cmpf ogt, %41, %42 : vector<16x256xf32>
    %44 = arith.extui %43 : vector<16x256xi1> to vector<16x256xi32>
    %45 = arith.sitofp %44 : vector<16x256xi32> to vector<16x256xf32>
    %46 = arith.mulf %41, %45 : vector<16x256xf32>
    %c48 = arith.constant 48 : index
    %c0_16 = arith.constant 0 : index
    %47 = vector.load %arg3[%c48, %c0_16] : memref<128x256xf32, #tpu.memory_space<vmem>>, vector<16x256xf32>
    tpu.vector_store %arg3[%c48, %c0_16], %46 {strides = array<i32>} : memref<128x256xf32, #tpu.memory_space<vmem>>, vector<16x256xf32>,
    %cst_17 = arith.constant 0.000000e+00 : f32
    %48 = vector.broadcast %cst_17 : f32 to vector<16x256xf32>
    %49 = arith.cmpf oeq, %40, %48 : vector<16x256xf32>
    %50 = arith.andi %43, %49 : vector<16x256xi1>
    %51 = arith.select %50, %41, %39 : vector<16x256xi1>, vector<16x256xf32>
    %52 = arith.addf %40, %45 : vector<16x256xf32>
    %53 = vector.extract_strided_slice %2 {offsets = [0, 1024], sizes = [16, 256], strides = [1, 1]} : vector<16x2048xf32> to vector<16x256xf32>
    %cst_18 = arith.constant 2.000000e+01 : f32
    %54 = vector.broadcast %cst_18 : f32 to vector<16x256xf32>
    %55 = arith.cmpf ogt, %53, %54 : vector<16x256xf32>
    %56 = arith.extui %55 : vector<16x256xi1> to vector<16x256xi32>
    %57 = arith.sitofp %56 : vector<16x256xi32> to vector<16x256xf32>
    %58 = arith.mulf %53, %57 : vector<16x256xf32>
    %c64 = arith.constant 64 : index
    %c0_19 = arith.constant 0 : index
    %59 = vector.load %arg3[%c64, %c0_19] : memref<128x256xf32, #tpu.memory_space<vmem>>, vector<16x256xf32>
    tpu.vector_store %arg3[%c64, %c0_19], %58 {strides = array<i32>} : memref<128x256xf32, #tpu.memory_space<vmem>>, vector<16x256xf32>,
    %cst_20 = arith.constant 0.000000e+00 : f32
    %60 = vector.broadcast %cst_20 : f32 to vector<16x256xf32>
    %61 = arith.cmpf oeq, %52, %60 : vector<16x256xf32>
    %62 = arith.andi %55, %61 : vector<16x256xi1>
    %63 = arith.select %62, %53, %51 : vector<16x256xi1>, vector<16x256xf32>
    %64 = arith.addf %52, %57 : vector<16x256xf32>
    %65 = vector.extract_strided_slice %2 {offsets = [0, 1280], sizes = [16, 256], strides = [1, 1]} : vector<16x2048xf32> to vector<16x256xf32>
    %cst_21 = arith.constant 2.000000e+01 : f32
    %66 = vector.broadcast %cst_21 : f32 to vector<16x256xf32>
    %67 = arith.cmpf ogt, %65, %66 : vector<16x256xf32>
    %68 = arith.extui %67 : vector<16x256xi1> to vector<16x256xi32>
    %69 = arith.sitofp %68 : vector<16x256xi32> to vector<16x256xf32>
    %70 = arith.mulf %65, %69 : vector<16x256xf32>
    %c80 = arith.constant 80 : index
    %c0_22 = arith.constant 0 : index
    %71 = vector.load %arg3[%c80, %c0_22] : memref<128x256xf32, #tpu.memory_space<vmem>>, vector<16x256xf32>
    tpu.vector_store %arg3[%c80, %c0_22], %70 {strides = array<i32>} : memref<128x256xf32, #tpu.memory_space<vmem>>, vector<16x256xf32>,
    %cst_23 = arith.constant 0.000000e+00 : f32
    %72 = vector.broadcast %cst_23 : f32 to vector<16x256xf32>
    %73 = arith.cmpf oeq, %64, %72 : vector<16x256xf32>
    %74 = arith.andi %67, %73 : vector<16x256xi1>
    %75 = arith.select %74, %65, %63 : vector<16x256xi1>, vector<16x256xf32>
    %76 = arith.addf %64, %69 : vector<16x256xf32>
    %77 = vector.extract_strided_slice %2 {offsets = [0, 1536], sizes = [16, 256], strides = [1, 1]} : vector<16x2048xf32> to vector<16x256xf32>
    %cst_24 = arith.constant 2.000000e+01 : f32
    %78 = vector.broadcast %cst_24 : f32 to vector<16x256xf32>
    %79 = arith.cmpf ogt, %77, %78 : vector<16x256xf32>
    %80 = arith.extui %79 : vector<16x256xi1> to vector<16x256xi32>
    %81 = arith.sitofp %80 : vector<16x256xi32> to vector<16x256xf32>
    %82 = arith.mulf %77, %81 : vector<16x256xf32>
    %c96 = arith.constant 96 : index
    %c0_25 = arith.constant 0 : index
    %83 = vector.load %arg3[%c96, %c0_25] : memref<128x256xf32, #tpu.memory_space<vmem>>, vector<16x256xf32>
    tpu.vector_store %arg3[%c96, %c0_25], %82 {strides = array<i32>} : memref<128x256xf32, #tpu.memory_space<vmem>>, vector<16x256xf32>,
    %cst_26 = arith.constant 0.000000e+00 : f32
    %84 = vector.broadcast %cst_26 : f32 to vector<16x256xf32>
    %85 = arith.cmpf oeq, %76, %84 : vector<16x256xf32>
    %86 = arith.andi %79, %85 : vector<16x256xi1>
    %87 = arith.select %86, %77, %75 : vector<16x256xi1>, vector<16x256xf32>
    %88 = arith.addf %76, %81 : vector<16x256xf32>
    %89 = vector.extract_strided_slice %2 {offsets = [0, 1792], sizes = [16, 256], strides = [1, 1]} : vector<16x2048xf32> to vector<16x256xf32>
    %cst_27 = arith.constant 2.000000e+01 : f32
    %90 = vector.broadcast %cst_27 : f32 to vector<16x256xf32>
    %91 = arith.cmpf ogt, %89, %90 : vector<16x256xf32>
    %92 = arith.extui %91 : vector<16x256xi1> to vector<16x256xi32>
    %93 = arith.sitofp %92 : vector<16x256xi32> to vector<16x256xf32>
    %94 = arith.mulf %89, %93 : vector<16x256xf32>
    %c112 = arith.constant 112 : index
    %c0_28 = arith.constant 0 : index
    %95 = vector.load %arg3[%c112, %c0_28] : memref<128x256xf32, #tpu.memory_space<vmem>>, vector<16x256xf32>
    tpu.vector_store %arg3[%c112, %c0_28], %94 {strides = array<i32>} : memref<128x256xf32, #tpu.memory_space<vmem>>, vector<16x256xf32>,
    %cst_29 = arith.constant 0.000000e+00 : f32
    %96 = vector.broadcast %cst_29 : f32 to vector<16x256xf32>
    %97 = arith.cmpf oeq, %88, %96 : vector<16x256xf32>
    %98 = arith.andi %91, %97 : vector<16x256xi1>
    %99 = arith.select %98, %89, %87 : vector<16x256xi1>, vector<16x256xf32>
    %100 = arith.addf %88, %93 : vector<16x256xf32>
    %101 = vector.shape_cast %99 : vector<16x256xf32> to vector<1x16x256xf32>
    %cst_30 = arith.constant dense<0xFF800000> : vector<1xf32>
    %102 = vector.multi_reduction <maximumf>, %101, %cst_30 [1, 2] : vector<1x16x256xf32> to vector<1xf32>
    %103 = vector.shape_cast %102 : vector<1xf32> to vector<1x1x1xf32>
    %104 = vector.extract %103[0, 0, 0] : f32 from vector<1x1x1xf32>
    %cst_31 = arith.constant 8.000000e+00 : f32
    %105 = arith.mulf %104, %cst_31 : f32
    %106 = vector.broadcast %105 : f32 to vector<16x256xf32>
    %107 = arith.addf %99, %106 : vector<16x256xf32>
    %108 = arith.mulf %100, %107 : vector<16x256xf32>
    %cst_32 = arith.constant dense<0xFF800000> : vector<16xf32>
    %109 = vector.multi_reduction <maximumf>, %108, %cst_32 [1] : vector<16x256xf32> to vector<16xf32>
    %110 = vector.shape_cast %109 : vector<16xf32> to vector<16x1xf32>
    %111 = vector.shape_cast %110 : vector<16x1xf32> to vector<1x16x1xf32>
    %cst_33 = arith.constant dense<0xFF800000> : vector<1xf32>
    %112 = vector.multi_reduction <maximumf>, %111, %cst_33 [1, 2] : vector<1x16x1xf32> to vector<1xf32>
    %113 = vector.shape_cast %112 : vector<1xf32> to vector<1x1x1xf32>
    %114 = vector.extract %113[0, 0, 0] : f32 from vector<1x1x1xf32>
    %115 = tpu.iota {dimensions = array<i32: 0>} : vector<16x1xi32>
    %cst_34 = arith.constant 0.000000e+00 : f32
    %116 = vector.broadcast %cst_34 : f32 to vector<16x1xf32>
    %c5_i32 = arith.constant 5 : i32
    %117 = vector.broadcast %c5_i32 : i32 to vector<16x1xi32>
    %118 = arith.cmpi sge, %115, %117 : vector<16x1xi32>
    %119 = arith.extui %118 : vector<16x1xi1> to vector<16x1xi32>
    %120 = arith.sitofp %119 : vector<16x1xi32> to vector<16x1xf32>
    %121 = arith.addf %116, %120 : vector<16x1xf32>
    %c10_i32 = arith.constant 10 : i32
    %122 = vector.broadcast %c10_i32 : i32 to vector<16x1xi32>
    %123 = arith.cmpi sge, %115, %122 : vector<16x1xi32>
    %124 = arith.extui %123 : vector<16x1xi1> to vector<16x1xi32>
    %125 = arith.sitofp %124 : vector<16x1xi32> to vector<16x1xf32>
    %126 = arith.addf %121, %125 : vector<16x1xf32>
    %c15_i32 = arith.constant 15 : i32
    %127 = vector.broadcast %c15_i32 : i32 to vector<16x1xi32>
    %128 = arith.cmpi slt, %115, %127 : vector<16x1xi32>
    %cst_35 = arith.constant 1.000000e+30 : f32
    %129 = vector.broadcast %cst_35 : f32 to vector<16x1xf32>
    %130 = arith.select %128, %126, %129 : vector<16x1xi1>, vector<16x1xf32>
    %131 = vector.broadcast %114 : f32 to vector<16x1xf32>
    %132 = arith.cmpf oeq, %110, %131 : vector<16x1xf32>
    %cst_36 = arith.constant 1.000000e+30 : f32
    %133 = vector.broadcast %cst_36 : f32 to vector<16x1xf32>
    %134 = arith.select %132, %130, %133 : vector<16x1xi1>, vector<16x1xf32>
    %135 = vector.shape_cast %134 : vector<16x1xf32> to vector<1x16x1xf32>
    %cst_37 = arith.constant dense<0x7F800000> : vector<1xf32>
    %136 = vector.multi_reduction <minimumf>, %135, %cst_37 [1, 2] : vector<1x16x1xf32> to vector<1xf32>
    %137 = vector.shape_cast %136 : vector<1xf32> to vector<1x1x1xf32>
    %138 = vector.extract %137[0, 0, 0] : f32 from vector<1x1x1xf32>
    %cst_38 = arith.constant 0.000000e+00 : f32
    %139 = arith.cmpf one, %114, %cst_38 : f32
    %cst_39 = arith.constant -1.000000e+00 : f32
    %140 = arith.select %139, %138, %cst_39 : f32
    %141 = arith.fptosi %140 : f32 to i32
    %c0_40 = arith.constant 0 : index
    %c0_41 = arith.constant 0 : index
    %142 = memref.load %arg4[%c0_40, %c0_41] : memref<1x1xi32, #tpu.memory_space<smem>>
    memref.store %141, %arg4[%c0_40, %c0_41] : memref<1x1xi32, #tpu.memory_space<smem>>
    return
  }
  func.func @transform_0(%arg0: i32) -> (i32, i32) {
    %c0_i32 = arith.constant 0 : i32
    %c0_i32_0 = arith.constant 0 : i32
    %c0_i32_1 = arith.constant 0 : i32
    return %c0_i32, %c0_i32_0 : i32, i32
  }
  func.func @transform_1(%arg0: i32) -> (i32, i32) {
    %c0_i32 = arith.constant 0 : i32
    %c0_i32_0 = arith.constant 0 : i32
    %c0_i32_1 = arith.constant 0 : i32
    return %c0_i32, %c0_i32_0 : i32, i32
  }
  func.func @transform_2(%arg0: i32) -> (i32, i32) {
    %c0_i32 = arith.constant 0 : i32
    %c0_i32_0 = arith.constant 0 : i32
    %c0_i32_1 = arith.constant 0 : i32
    return %c0_i32, %c0_i32_0 : i32, i32
  }
  func.func @transform_3(%arg0: i32) -> (i32, i32) {
    %c0_i32 = arith.constant 0 : i32
    %c0_i32_0 = arith.constant 0 : i32
    %c0_i32_1 = arith.constant 0 : i32
    return %c0_i32, %c0_i32_0 : i32, i32
  }
}

</mosaic_0001>

<llo_original>
// kernel: snn_forward.1
$region0: #{snn_forward.1}
  #allocation0 [shape = 'u32[]', space=smem, size = 0x4, offset = 0x4, fixed_abs, tag = 'smem constant byte address 0x4 - core index']
  #allocation1 [shape = 'u32[144,128]{1,0:T(1,128)}', space=vmem, size = 0x12000, scoped, tag = 'internal scratch']
  %s0 = inlined_call_operand.vmem [shape: f32[16,40], index: 0, kind: input, shape index: {}]
  %s1 = inlined_call_operand.vmem [shape: f32[40,2048], index: 1, kind: input, shape index: {}]
  %s2 = inlined_call_operand.vmem [shape: f32[128,256], index: 2, kind: output, shape index: {0}]
  %s3 = inlined_call_operand.hbm [shape: s32[1,1], index: 3, kind: output, shape index: {1}]
  %4 = xla_tuple %s2, %s3
  %s5 = sld [smem:[#allocation0]]
  $region26: #{snn_forward.1} parent=0
    _
  %s7 = ssub.s32 1, %s5
  %s8 = scalar_select 0, %s7, %s5
  $region1: #{snn_forward.1} parent=0
    #allocation2 [shape = 'u8[512]{0}', space=smem, size = 0x200, scoped, tag = 'output window, operand 1, single buffered']
    #allocation3 [shape = 's32[1]{0}', space=sflag, size = 0x4, scoped, tag = 'scoped memory for snn_forward.1']
    %9 = vsyncpa [#allocation3], 0
    // Predicated region
    $region2: #{snn_forward.1} parent=1 // pred_check
      _
    $region3: #{snn_forward.1} parent=1 // pred_check_branch
      %11 = sbr.rel (0) target = $region5
    $region4: #{snn_forward.1} parent=1 // pred_region
      _
    $region5: #{snn_forward.1} parent=1 // pred_fallthru
      _
    // Predicated region
    $region6: #{snn_forward.1} parent=1 // pred_check
      _
    $region7: #{snn_forward.1} parent=1 // pred_check_branch
      %13 = sbr.rel (0) target = $region9
    $region8: #{snn_forward.1} parent=1 // pred_region
      _
    $region9: #{snn_forward.1} parent=1 // pred_fallthru
      _
    %v14 = vld [vmem:[%s0] sm:$0xff]
    %v15 = vld [vmem:[%s0 + $0x8] sm:$0xff]
    %v16 = vld [vmem:[%s1] sm:$0xff]
    %v17 = vld [vmem:[%s1 + $0x8] sm:$0xff]
    %v18 = vld [vmem:[%s1 + $0x10] sm:$0xff]
    %v19 = vld [vmem:[%s1 + $0x18] sm:$0xff]
    %v20 = vld [vmem:[%s1 + $0x20] sm:$0xff]
    %v21 = vld [vmem:[%s1 + $0x28] sm:$0xff]
    %v22 = vld [vmem:[%s1 + $0x30] sm:$0xff]
    %v23 = vld [vmem:[%s1 + $0x38] sm:$0xff]
    %v24 = vld [vmem:[%s1 + $0x40] sm:$0xff]
    %v25 = vld [vmem:[%s1 + $0x48] sm:$0xff]
    %v26 = vld [vmem:[%s1 + $0x50] sm:$0xff]
    %v27 = vld [vmem:[%s1 + $0x58] sm:$0xff]
    %v28 = vld [vmem:[%s1 + $0x60] sm:$0xff]
    %v29 = vld [vmem:[%s1 + $0x68] sm:$0xff]
    %v30 = vld [vmem:[%s1 + $0x70] sm:$0xff]
    %v31 = vld [vmem:[%s1 + $0x78] sm:$0xff]
    %v32 = vld [vmem:[%s1 + $0x80] sm:$0xff]
    %v33 = vld [vmem:[%s1 + $0x88] sm:$0xff]
    %v34 = vld [vmem:[%s1 + $0x90] sm:$0xff]
    %v35 = vld [vmem:[%s1 + $0x98] sm:$0xff]
    %v36 = vld [vmem:[%s1 + $0xa0] sm:$0xff]
    %v37 = vld [vmem:[%s1 + $0xa8] sm:$0xff]
    %v38 = vld [vmem:[%s1 + $0xb0] sm:$0xff]
    %v39 = vld [vmem:[%s1 + $0xb8] sm:$0xff]
    %v40 = vld [vmem:[%s1 + $0xc0] sm:$0xff]
    %v41 = vld [vmem:[%s1 + $0xc8] sm:$0xff]
    %v42 = vld [vmem:[%s1 + $0xd0] sm:$0xff]
    %v43 = vld [vmem:[%s1 + $0xd8] sm:$0xff]
    %v44 = vld [vmem:[%s1 + $0xe0] sm:$0xff]
    %v45 = vld [vmem:[%s1 + $0xe8] sm:$0xff]
    %v46 = vld [vmem:[%s1 + $0xf0] sm:$0xff]
    %v47 = vld [vmem:[%s1 + $0xf8] sm:$0xff]
    %v48 = vld [vmem:[%s1 + $0x100] sm:$0xff]
    %v49 = vld [vmem:[%s1 + $0x108] sm:$0xff]
    %v50 = vld [vmem:[%s1 + $0x110] sm:$0xff]
    %v51 = vld [vmem:[%s1 + $0x118] sm:$0xff]
    %v52 = vld [vmem:[%s1 + $0x120] sm:$0xff]
    %v53 = vld [vmem:[%s1 + $0x128] sm:$0xff]
    %v54 = vld [vmem:[%s1 + $0x130] sm:$0xff]
    %v55 = vld [vmem:[%s1 + $0x138] sm:$0xff]
    %v56 = vld [vmem:[%s1 + $0x140] sm:$0xff]
    %v57 = vld [vmem:[%s1 + $0x148] sm:$0xff]
    %v58 = vld [vmem:[%s1 + $0x150] sm:$0xff]
    %v59 = vld [vmem:[%s1 + $0x158] sm:$0xff]
    %v60 = vld [vmem:[%s1 + $0x160] sm:$0xff]
    %v61 = vld [vmem:[%s1 + $0x168] sm:$0xff]
    %v62 = vld [vmem:[%s1 + $0x170] sm:$0xff]
    %v63 = vld [vmem:[%s1 + $0x178] sm:$0xff]
    %v64 = vld [vmem:[%s1 + $0x180] sm:$0xff]
    %v65 = vld [vmem:[%s1 + $0x188] sm:$0xff]
    %v66 = vld [vmem:[%s1 + $0x190] sm:$0xff]
    %v67 = vld [vmem:[%s1 + $0x198] sm:$0xff]
    %v68 = vld [vmem:[%s1 + $0x1a0] sm:$0xff]
    %v69 = vld [vmem:[%s1 + $0x1a8] sm:$0xff]
    %v70 = vld [vmem:[%s1 + $0x1b0] sm:$0xff]
    %v71 = vld [vmem:[%s1 + $0x1b8] sm:$0xff]
    %v72 = vld [vmem:[%s1 + $0x1c0] sm:$0xff]
    %v73 = vld [vmem:[%s1 + $0x1c8] sm:$0xff]
    %v74 = vld [vmem:[%s1 + $0x1d0] sm:$0xff]
    %v75 = vld [vmem:[%s1 + $0x1d8] sm:$0xff]
    %v76 = vld [vmem:[%s1 + $0x1e0] sm:$0xff]
    %v77 = vld [vmem:[%s1 + $0x1e8] sm:$0xff]
    %v78 = vld [vmem:[%s1 + $0x1f0] sm:$0xff]
    %v79 = vld [vmem:[%s1 + $0x1f8] sm:$0xff]
    %v80 = vld [vmem:[%s1 + $0x200] sm:$0xff]
    %v81 = vld [vmem:[%s1 + $0x208] sm:$0xff]
    %v82 = vld [vmem:[%s1 + $0x210] sm:$0xff]
    %v83 = vld [vmem:[%s1 + $0x218] sm:$0xff]
    %v84 = vld [vmem:[%s1 + $0x220] sm:$0xff]
    %v85 = vld [vmem:[%s1 + $0x228] sm:$0xff]
    %v86 = vld [vmem:[%s1 + $0x230] sm:$0xff]
    %v87 = vld [vmem:[%s1 + $0x238] sm:$0xff]
    %v88 = vld [vmem:[%s1 + $0x240] sm:$0xff]
    %v89 = vld [vmem:[%s1 + $0x248] sm:$0xff]
    %v90 = vld [vmem:[%s1 + $0x250] sm:$0xff]
    %v91 = vld [vmem:[%s1 + $0x258] sm:$0xff]
    %v92 = vld [vmem:[%s1 + $0x260] sm:$0xff]
    %v93 = vld [vmem:[%s1 + $0x268] sm:$0xff]
    %v94 = vld [vmem:[%s1 + $0x270] sm:$0xff]
    %v95 = vld [vmem:[%s1 + $0x278] sm:$0xff]
    %vm96 = vcmask 326656
    %v98 = vsel %vm96, %v14, 0
    %v101 = vsel %vm96, %v15, 0
    %103 = vmatprep.subr.mxu0 %v17
    %104 = vmatpush1.msra.mxu0 %v16
    %105 = vmatprep.subr.mxu0 %v33
    %106 = vmatpush1.msra.mxu0 %v32
    %107 = vmatprep.subr.mxu0 %v49
    %108 = vmatpush1.msra.mxu0 %v48
    %109 = vmatprep.subr.mxu0 %v65
    %110 = vmatpush1.msra.mxu0 %v64
    %111 = vmatprep.subr.mxu0 %v81
    %112 = vmatpush1.msra.mxu0 %v80
    %113 = vmatprep.subr.mxu0 0.0
    %114 = vmatpush1.msra.mxu0 0.0
    %115 = vmatprep.subr.mxu0 0.0
    %116 = vmatpush1.msra.mxu0 0.0
    %117 = vmatprep.subr.mxu0 0.0
    %118 = vmatpush1.msra.mxu0 0.0
    %119 = vmatprep.subr.mxu0 0.0
    %120 = vmatpush1.msra.mxu0 0.0
    %121 = vmatprep.subr.mxu0 0.0
    %122 = vmatpush1.msra.mxu0 0.0
    %123 = vmatprep.subr.mxu0 0.0
    %124 = vmatpush1.msra.mxu0 0.0
    %125 = vmatprep.subr.mxu0 0.0
    %126 = vmatpush1.msra.mxu0 0.0
    %127 = vmatprep.subr.mxu0 0.0
    %128 = vmatpush1.msra.mxu0 0.0
    %129 = vmatprep.subr.mxu0 0.0
    %130 = vmatpush1.msra.mxu0 0.0
    %131 = vmatprep.subr.mxu0 0.0
    %132 = vmatpush1.msra.mxu0 0.0
    %133 = vmatprep.subr.mxu0 0.0
    %134 = vmatpush1.msra.mxu0 0.0
    %135 = vmatprep.subr.mxu0 0.0
    %136 = vmatpush1.msra.mxu0 0.0
    %137 = vmatprep.subr.mxu0 0.0
    %138 = vmatpush1.msra.mxu0 0.0
    %139 = vmatprep.subr.mxu0 0.0
    %140 = vmatpush1.msra.mxu0 0.0
    %141 = vmatprep.subr.mxu0 0.0
    %142 = vmatpush1.msra.mxu0 0.0
    %143 = vmatprep.subr.mxu0 0.0
    %144 = vmatpush1.msra.mxu0 0.0
    %145 = vmatprep.subr.mxu0 0.0
    %146 = vmatpush1.msra.mxu0 0.0
    %147 = vmatprep.subr.mxu0 0.0
    %148 = vmatpush1.msra.mxu0 0.0
    %149 = vmatprep.subr.mxu0 0.0
    %150 = vmatpush1.msra.mxu0 0.0
    %151 = vmatprep.subr.mxu0 0.0
    %152 = vmatpush1.msra.mxu0 0.0
    %153 = vmatprep.subr.mxu0 0.0
    %154 = vmatpush1.msra.mxu0 0.0
    %155 = vmatprep.subr.mxu0 0.0
    %156 = vmatpush1.msra.mxu0 0.0
    %157 = vmatprep.subr.mxu0 0.0
    %158 = vmatpush1.msra.mxu0 0.0
    %159 = vmatprep.subr.mxu0 0.0
    %160 = vmatpush1.msra.mxu0 0.0
    %161 = vmatprep.subr.mxu0 0.0
    %162 = vmatpush1.msra.mxu0 0.0
    %163 = vmatprep.subr.mxu0 0.0
    %164 = vmatpush1.msra.mxu0 0.0
    %165 = vmatprep.subr.mxu0 0.0
    %166 = vmatpush1.msra.mxu0 0.0
    %167 = vmatprep.mubr.f32.mxu0 0.0
    %168 = vmatmul.mubr.f32.gmra.mrb[0].mxu0 %v98
    %v169 = vpop.f32.mrb[0].mxu0
    %v170 = vadd.f32 0.0, %v169
    %v171 = vpop.f32.mrb[0].mxu0
    %v172 = vadd.f32 0.0, %v171
    %173 = vmatprep.mubr.f32.mxu0 0.0
    %174 = vmatmul.mubr.f32.gmra.mrb[0].mxu0 %v101
    %v175 = vpop.f32.mrb[0].mxu0
    %v176 = vadd.f32 0.0, %v175
    %v177 = vpop.f32.mrb[0].mxu0
    %v178 = vadd.f32 0.0, %v177
    %179 = vdwg.mxu0
    %180 = vmatprep.subr.mxu0 %v19
    %181 = vmatpush1.msra.mxu0 %v18
    %182 = vmatprep.subr.mxu0 %v35
    %183 = vmatpush1.msra.mxu0 %v34
    %184 = vmatprep.subr.mxu0 %v51
    %185 = vmatpush1.msra.mxu0 %v50
    %186 = vmatprep.subr.mxu0 %v67
    %187 = vmatpush1.msra.mxu0 %v66
    %188 = vmatprep.subr.mxu0 %v83
    %189 = vmatpush1.msra.mxu0 %v82
    %190 = vmatprep.subr.mxu0 0.0
    %191 = vmatpush1.msra.mxu0 0.0
    %192 = vmatprep.subr.mxu0 0.0
    %193 = vmatpush1.msra.mxu0 0.0
    %194 = vmatprep.subr.mxu0 0.0
    %195 = vmatpush1.msra.mxu0 0.0
    %196 = vmatprep.subr.mxu0 0.0
    %197 = vmatpush1.msra.mxu0 0.0
    %198 = vmatprep.subr.mxu0 0.0
    %199 = vmatpush1.msra.mxu0 0.0
    %200 = vmatprep.subr.mxu0 0.0
    %201 = vmatpush1.msra.mxu0 0.0
    %202 = vmatprep.subr.mxu0 0.0
    %203 = vmatpush1.msra.mxu0 0.0
    %204 = vmatprep.subr.mxu0 0.0
    %205 = vmatpush1.msra.mxu0 0.0
    %206 = vmatprep.subr.mxu0 0.0
    %207 = vmatpush1.msra.mxu0 0.0
    %208 = vmatprep.subr.mxu0 0.0
    %209 = vmatpush1.msra.mxu0 0.0
    %210 = vmatprep.subr.mxu0 0.0
    %211 = vmatpush1.msra.mxu0 0.0
    %212 = vmatprep.subr.mxu0 0.0
    %213 = vmatpush1.msra.mxu0 0.0
    %214 = vmatprep.subr.mxu0 0.0
    %215 = vmatpush1.msra.mxu0 0.0
    %216 = vmatprep.subr.mxu0 0.0
    %217 = vmatpush1.msra.mxu0 0.0
    %218 = vmatprep.subr.mxu0 0.0
    %219 = vmatpush1.msra.mxu0 0.0
    %220 = vmatprep.subr.mxu0 0.0
    %221 = vmatpush1.msra.mxu0 0.0
    %222 = vmatprep.subr.mxu0 0.0
    %223 = vmatpush1.msra.mxu0 0.0
    %224 = vmatprep.subr.mxu0 0.0
    %225 = vmatpush1.msra.mxu0 0.0
    %226 = vmatprep.subr.mxu0 0.0
    %227 = vmatpush1.msra.mxu0 0.0
    %228 = vmatprep.subr.mxu0 0.0
    %229 = vmatpush1.msra.mxu0 0.0
    %230 = vmatprep.subr.mxu0 0.0
    %231 = vmatpush1.msra.mxu0 0.0
    %232 = vmatprep.subr.mxu0 0.0
    %233 = vmatpush1.msra.mxu0 0.0
    %234 = vmatprep.subr.mxu0 0.0
    %235 = vmatpush1.msra.mxu0 0.0
    %236 = vmatprep.subr.mxu0 0.0
    %237 = vmatpush1.msra.mxu0 0.0
    %238 = vmatprep.subr.mxu0 0.0
    %239 = vmatpush1.msra.mxu0 0.0
    %240 = vmatprep.subr.mxu0 0.0
    %241 = vmatpush1.msra.mxu0 0.0
    %242 = vmatprep.subr.mxu0 0.0
    %243 = vmatpush1.msra.mxu0 0.0
    %244 = vmatprep.mubr.f32.mxu0 0.0
    %245 = vmatmul.mubr.f32.gmra.mrb[0].mxu0 %v98
    %v246 = vpop.f32.mrb[0].mxu0
    %v247 = vadd.f32 0.0, %v246
    %v248 = vpop.f32.mrb[0].mxu0
    %v249 = vadd.f32 0.0, %v248
    %250 = vmatprep.mubr.f32.mxu0 0.0
    %251 = vmatmul.mubr.f32.gmra.mrb[0].mxu0 %v101
    %v252 = vpop.f32.mrb[0].mxu0
    %v253 = vadd.f32 0.0, %v252
    %v254 = vpop.f32.mrb[0].mxu0
    %v255 = vadd.f32 0.0, %v254
    %256 = vdwg.mxu0
    %257 = vmatprep.subr.mxu0 %v21
    %258 = vmatpush1.msra.mxu0 %v20
    %259 = vmatprep.subr.mxu0 %v37
    %260 = vmatpush1.msra.mxu0 %v36
    %261 = vmatprep.subr.mxu0 %v53
    %262 = vmatpush1.msra.mxu0 %v52
    %263 = vmatprep.subr.mxu0 %v69
    %264 = vmatpush1.msra.mxu0 %v68
    %265 = vmatprep.subr.mxu0 %v85
    %266 = vmatpush1.msra.mxu0 %v84
    %267 = vmatprep.subr.mxu0 0.0
    %268 = vmatpush1.msra.mxu0 0.0
    %269 = vmatprep.subr.mxu0 0.0
    %270 = vmatpush1.msra.mxu0 0.0
    %271 = vmatprep.subr.mxu0 0.0
    %272 = vmatpush1.msra.mxu0 0.0
    %273 = vmatprep.subr.mxu0 0.0
    %274 = vmatpush1.msra.mxu0 0.0
    %275 = vmatprep.subr.mxu0 0.0
    %276 = vmatpush1.msra.mxu0 0.0
    %277 = vmatprep.subr.mxu0 0.0
    %278 = vmatpush1.msra.mxu0 0.0
    %279 = vmatprep.subr.mxu0 0.0
    %280 = vmatpush1.msra.mxu0 0.0
    %281 = vmatprep.subr.mxu0 0.0
    %282 = vmatpush1.msra.mxu0 0.0
    %283 = vmatprep.subr.mxu0 0.0
    %284 = vmatpush1.msra.mxu0 0.0
    %285 = vmatprep.subr.mxu0 0.0
    %286 = vmatpush1.msra.mxu0 0.0
    %287 = vmatprep.subr.mxu0 0.0
    %288 = vmatpush1.msra.mxu0 0.0
    %289 = vmatprep.subr.mxu0 0.0
    %290 = vmatpush1.msra.mxu0 0.0
    %291 = vmatprep.subr.mxu0 0.0
    %292 = vmatpush1.msra.mxu0 0.0
    %293 = vmatprep.subr.mxu0 0.0
    %294 = vmatpush1.msra.mxu0 0.0
    %295 = vmatprep.subr.mxu0 0.0
    %296 = vmatpush1.msra.mxu0 0.0
    %297 = vmatprep.subr.mxu0 0.0
    %298 = vmatpush1.msra.mxu0 0.0
    %299 = vmatprep.subr.mxu0 0.0
    %300 = vmatpush1.msra.mxu0 0.0
    %301 = vmatprep.subr.mxu0 0.0
    %302 = vmatpush1.msra.mxu0 0.0
    %303 = vmatprep.subr.mxu0 0.0
    %304 = vmatpush1.msra.mxu0 0.0
    %305 = vmatprep.subr.mxu0 0.0
    %306 = vmatpush1.msra.mxu0 0.0
    %307 = vmatprep.subr.mxu0 0.0
    %308 = vmatpush1.msra.mxu0 0.0
    %309 = vmatprep.subr.mxu0 0.0
    %310 = vmatpush1.msra.mxu0 0.0
    %311 = vmatprep.subr.mxu0 0.0
    %312 = vmatpush1.msra.mxu0 0.0
    %313 = vmatprep.subr.mxu0 0.0
    %314 = vmatpush1.msra.mxu0 0.0
    %315 = vmatprep.subr.mxu0 0.0
    %316 = vmatpush1.msra.mxu0 0.0
    %317 = vmatprep.subr.mxu0 0.0
    %318 = vmatpush1.msra.mxu0 0.0
    %319 = vmatprep.subr.mxu0 0.0
    %320 = vmatpush1.msra.mxu0 0.0
    %321 = vmatprep.mubr.f32.mxu0 0.0
    %322 = vmatmul.mubr.f32.gmra.mrb[0].mxu0 %v98
    %v323 = vpop.f32.mrb[0].mxu0
    %v324 = vadd.f32 0.0, %v323
    %v325 = vpop.f32.mrb[0].mxu0
    %v326 = vadd.f32 0.0, %v325
    %327 = vmatprep.mubr.f32.mxu0 0.0
    %328 = vmatmul.mubr.f32.gmra.mrb[0].mxu0 %v101
    %v329 = vpop.f32.mrb[0].mxu0
    %v330 = vadd.f32 0.0, %v329
    %v331 = vpop.f32.mrb[0].mxu0
    %v332 = vadd.f32 0.0, %v331
    %333 = vdwg.mxu0
    %334 = vmatprep.subr.mxu0 %v23
    %335 = vmatpush1.msra.mxu0 %v22
    %336 = vmatprep.subr.mxu0 %v39
    %337 = vmatpush1.msra.mxu0 %v38
    %338 = vmatprep.subr.mxu0 %v55
    %339 = vmatpush1.msra.mxu0 %v54
    %340 = vmatprep.subr.mxu0 %v71
    %341 = vmatpush1.msra.mxu0 %v70
    %342 = vmatprep.subr.mxu0 %v87
    %343 = vmatpush1.msra.mxu0 %v86
    %344 = vmatprep.subr.mxu0 0.0
    %345 = vmatpush1.msra.mxu0 0.0
    %346 = vmatprep.subr.mxu0 0.0
    %347 = vmatpush1.msra.mxu0 0.0
    %348 = vmatprep.subr.mxu0 0.0
    %349 = vmatpush1.msra.mxu0 0.0
    %350 = vmatprep.subr.mxu0 0.0
    %351 = vmatpush1.msra.mxu0 0.0
    %352 = vmatprep.subr.mxu0 0.0
    %353 = vmatpush1.msra.mxu0 0.0
    %354 = vmatprep.subr.mxu0 0.0
    %355 = vmatpush1.msra.mxu0 0.0
    %356 = vmatprep.subr.mxu0 0.0
    %357 = vmatpush1.msra.mxu0 0.0
    %358 = vmatprep.subr.mxu0 0.0
    %359 = vmatpush1.msra.mxu0 0.0
    %360 = vmatprep.subr.mxu0 0.0
    %361 = vmatpush1.msra.mxu0 0.0
    %362 = vmatprep.subr.mxu0 0.0
    %363 = vmatpush1.msra.mxu0 0.0
    %364 = vmatprep.subr.mxu0 0.0
    %365 = vmatpush1.msra.mxu0 0.0
    %366 = vmatprep.subr.mxu0 0.0
    %367 = vmatpush1.msra.mxu0 0.0
    %368 = vmatprep.subr.mxu0 0.0
    %369 = vmatpush1.msra.mxu0 0.0
    %370 = vmatprep.subr.mxu0 0.0
    %371 = vmatpush1.msra.mxu0 0.0
    %372 = vmatprep.subr.mxu0 0.0
    %373 = vmatpush1.msra.mxu0 0.0
    %374 = vmatprep.subr.mxu0 0.0
    %375 = vmatpush1.msra.mxu0 0.0
    %376 = vmatprep.subr.mxu0 0.0
    %377 = vmatpush1.msra.mxu0 0.0
    %378 = vmatprep.subr.mxu0 0.0
    %379 = vmatpush1.msra.mxu0 0.0
    %380 = vmatprep.subr.mxu0 0.0
    %381 = vmatpush1.msra.mxu0 0.0
    %382 = vmatprep.subr.mxu0 0.0
    %383 = vmatpush1.msra.mxu0 0.0
    %384 = vmatprep.subr.mxu0 0.0
    %385 = vmatpush1.msra.mxu0 0.0
    %386 = vmatprep.subr.mxu0 0.0
    %387 = vmatpush1.msra.mxu0 0.0
    %388 = vmatprep.subr.mxu0 0.0
    %389 = vmatpush1.msra.mxu0 0.0
    %390 = vmatprep.subr.mxu0 0.0
    %391 = vmatpush1.msra.mxu0 0.0
    %392 = vmatprep.subr.mxu0 0.0
    %393 = vmatpush1.msra.mxu0 0.0
    %394 = vmatprep.subr.mxu0 0.0
    %395 = vmatpush1.msra.mxu0 0.0
    %396 = vmatprep.subr.mxu0 0.0
    %397 = vmatpush1.msra.mxu0 0.0
    %398 = vmatprep.mubr.f32.mxu0 0.0
    %399 = vmatmul.mubr.f32.gmra.mrb[0].mxu0 %v98
    %v400 = vpop.f32.mrb[0].mxu0
    %v401 = vadd.f32 0.0, %v400
    %v402 = vpop.f32.mrb[0].mxu0
    %v403 = vadd.f32 0.0, %v402
    %404 = vmatprep.mubr.f32.mxu0 0.0
    %405 = vmatmul.mubr.f32.gmra.mrb[0].mxu0 %v101
    %v406 = vpop.f32.mrb[0].mxu0
    %v407 = vadd.f32 0.0, %v406
    %v408 = vpop.f32.mrb[0].mxu0
    %v409 = vadd.f32 0.0, %v408
    %410 = vdwg.mxu0
    %411 = vmatprep.subr.mxu0 %v25
    %412 = vmatpush1.msra.mxu0 %v24
    %413 = vmatprep.subr.mxu0 %v41
    %414 = vmatpush1.msra.mxu0 %v40
    %415 = vmatprep.subr.mxu0 %v57
    %416 = vmatpush1.msra.mxu0 %v56
    %417 = vmatprep.subr.mxu0 %v73
    %418 = vmatpush1.msra.mxu0 %v72
    %419 = vmatprep.subr.mxu0 %v89
    %420 = vmatpush1.msra.mxu0 %v88
    %421 = vmatprep.subr.mxu0 0.0
    %422 = vmatpush1.msra.mxu0 0.0
    %423 = vmatprep.subr.mxu0 0.0
    %424 = vmatpush1.msra.mxu0 0.0
    %425 = vmatprep.subr.mxu0 0.0
    %426 = vmatpush1.msra.mxu0 0.0
    %427 = vmatprep.subr.mxu0 0.0
    %428 = vmatpush1.msra.mxu0 0.0
    %429 = vmatprep.subr.mxu0 0.0
    %430 = vmatpush1.msra.mxu0 0.0
    %431 = vmatprep.subr.mxu0 0.0
    %432 = vmatpush1.msra.mxu0 0.0
    %433 = vmatprep.subr.mxu0 0.0
    %434 = vmatpush1.msra.mxu0 0.0
    %435 = vmatprep.subr.mxu0 0.0
    %436 = vmatpush1.msra.mxu0 0.0
    %437 = vmatprep.subr.mxu0 0.0
    %438 = vmatpush1.msra.mxu0 0.0
    %439 = vmatprep.subr.mxu0 0.0
    %440 = vmatpush1.msra.mxu0 0.0
    %441 = vmatprep.subr.mxu0 0.0
    %442 = vmatpush1.msra.mxu0 0.0
    %443 = vmatprep.subr.mxu0 0.0
    %444 = vmatpush1.msra.mxu0 0.0
    %445 = vmatprep.subr.mxu0 0.0
    %446 = vmatpush1.msra.mxu0 0.0
    %447 = vmatprep.subr.mxu0 0.0
    %448 = vmatpush1.msra.mxu0 0.0
    %449 = vmatprep.subr.mxu0 0.0
    %450 = vmatpush1.msra.mxu0 0.0
    %451 = vmatprep.subr.mxu0 0.0
    %452 = vmatpush1.msra.mxu0 0.0
    %453 = vmatprep.subr.mxu0 0.0
    %454 = vmatpush1.msra.mxu0 0.0
    %455 = vmatprep.subr.mxu0 0.0
    %456 = vmatpush1.msra.mxu0 0.0
    %457 = vmatprep.subr.mxu0 0.0
    %458 = vmatpush1.msra.mxu0 0.0
    %459 = vmatprep.subr.mxu0 0.0
    %460 = vmatpush1.msra.mxu0 0.0
    %461 = vmatprep.subr.mxu0 0.0
    %462 = vmatpush1.msra.mxu0 0.0
    %463 = vmatprep.subr.mxu0 0.0
    %464 = vmatpush1.msra.mxu0 0.0
    %465 = vmatprep.subr.mxu0 0.0
    %466 = vmatpush1.msra.mxu0 0.0
    %467 = vmatprep.subr.mxu0 0.0
    %468 = vmatpush1.msra.mxu0 0.0
    %469 = vmatprep.subr.mxu0 0.0
    %470 = vmatpush1.msra.mxu0 0.0
    %471 = vmatprep.subr.mxu0 0.0
    %472 = vmatpush1.msra.mxu0 0.0
    %473 = vmatprep.subr.mxu0 0.0
    %474 = vmatpush1.msra.mxu0 0.0
    %475 = vmatprep.mubr.f32.mxu0 0.0
    %476 = vmatmul.mubr.f32.gmra.mrb[0].mxu0 %v98
    %v477 = vpop.f32.mrb[0].mxu0
    %v478 = vadd.f32 0.0, %v477
    %v479 = vpop.f32.mrb[0].mxu0
    %v480 = vadd.f32 0.0, %v479
    %481 = vmatprep.mubr.f32.mxu0 0.0
    %482 = vmatmul.mubr.f32.gmra.mrb[0].mxu0 %v101
    %v483 = vpop.f32.mrb[0].mxu0
    %v484 = vadd.f32 0.0, %v483
    %v485 = vpop.f32.mrb[0].mxu0
    %v486 = vadd.f32 0.0, %v485
    %487 = vdwg.mxu0
    %488 = vmatprep.subr.mxu0 %v27
    %489 = vmatpush1.msra.mxu0 %v26
    %490 = vmatprep.subr.mxu0 %v43
    %491 = vmatpush1.msra.mxu0 %v42
    %492 = vmatprep.subr.mxu0 %v59
    %493 = vmatpush1.msra.mxu0 %v58
    %494 = vmatprep.subr.mxu0 %v75
    %495 = vmatpush1.msra.mxu0 %v74
    %496 = vmatprep.subr.mxu0 %v91
    %497 = vmatpush1.msra.mxu0 %v90
    %498 = vmatprep.subr.mxu0 0.0
    %499 = vmatpush1.msra.mxu0 0.0
    %500 = vmatprep.subr.mxu0 0.0
    %501 = vmatpush1.msra.mxu0 0.0
    %502 = vmatprep.subr.mxu0 0.0
    %503 = vmatpush1.msra.mxu0 0.0
    %504 = vmatprep.subr.mxu0 0.0
    %505 = vmatpush1.msra.mxu0 0.0
    %506 = vmatprep.subr.mxu0 0.0
    %507 = vmatpush1.msra.mxu0 0.0
    %508 = vmatprep.subr.mxu0 0.0
    %509 = vmatpush1.msra.mxu0 0.0
    %510 = vmatprep.subr.mxu0 0.0
    %511 = vmatpush1.msra.mxu0 0.0
    %512 = vmatprep.subr.mxu0 0.0
    %513 = vmatpush1.msra.mxu0 0.0
    %514 = vmatprep.subr.mxu0 0.0
    %515 = vmatpush1.msra.mxu0 0.0
    %516 = vmatprep.subr.mxu0 0.0
    %517 = vmatpush1.msra.mxu0 0.0
    %518 = vmatprep.subr.mxu0 0.0
    %519 = vmatpush1.msra.mxu0 0.0
    %520 = vmatprep.subr.mxu0 0.0
    %521 = vmatpush1.msra.mxu0 0.0
    %522 = vmatprep.subr.mxu0 0.0
    %523 = vmatpush1.msra.mxu0 0.0
    %524 = vmatprep.subr.mxu0 0.0
    %525 = vmatpush1.msra.mxu0 0.0
    %526 = vmatprep.subr.mxu0 0.0
    %527 = vmatpush1.msra.mxu0 0.0
    %528 = vmatprep.subr.mxu0 0.0
    %529 = vmatpush1.msra.mxu0 0.0
    %530 = vmatprep.subr.mxu0 0.0
    %531 = vmatpush1.msra.mxu0 0.0
    %532 = vmatprep.subr.mxu0 0.0
    %533 = vmatpush1.msra.mxu0 0.0
    %534 = vmatprep.subr.mxu0 0.0
    %535 = vmatpush1.msra.mxu0 0.0
    %536 = vmatprep.subr.mxu0 0.0
    %537 = vmatpush1.msra.mxu0 0.0
    %538 = vmatprep.subr.mxu0 0.0
    %539 = vmatpush1.msra.mxu0 0.0
    %540 = vmatprep.subr.mxu0 0.0
    %541 = vmatpush1.msra.mxu0 0.0
    %542 = vmatprep.subr.mxu0 0.0
    %543 = vmatpush1.msra.mxu0 0.0
    %544 = vmatprep.subr.mxu0 0.0
    %545 = vmatpush1.msra.mxu0 0.0
    %546 = vmatprep.subr.mxu0 0.0
    %547 = vmatpush1.msra.mxu0 0.0
    %548 = vmatprep.subr.mxu0 0.0
    %549 = vmatpush1.msra.mxu0 0.0
    %550 = vmatprep.subr.mxu0 0.0
    %551 = vmatpush1.msra.mxu0 0.0
    %552 = vmatprep.mubr.f32.mxu0 0.0
    %553 = vmatmul.mubr.f32.gmra.mrb[0].mxu0 %v98
    %v554 = vpop.f32.mrb[0].mxu0
    %v555 = vadd.f32 0.0, %v554
    %v556 = vpop.f32.mrb[0].mxu0
    %v557 = vadd.f32 0.0, %v556
    %558 = vmatprep.mubr.f32.mxu0 0.0
    %559 = vmatmul.mubr.f32.gmra.mrb[0].mxu0 %v101
    %v560 = vpop.f32.mrb[0].mxu0
    %v561 = vadd.f32 0.0, %v560
    %v562 = vpop.f32.mrb[0].mxu0
    %v563 = vadd.f32 0.0, %v562
    %564 = vdwg.mxu0
    %565 = vmatprep.subr.mxu0 %v29
    %566 = vmatpush1.msra.mxu0 %v28
    %567 = vmatprep.subr.mxu0 %v45
    %568 = vmatpush1.msra.mxu0 %v44
    %569 = vmatprep.subr.mxu0 %v61
    %570 = vmatpush1.msra.mxu0 %v60
    %571 = vmatprep.subr.mxu0 %v77
    %572 = vmatpush1.msra.mxu0 %v76
    %573 = vmatprep.subr.mxu0 %v93
    %574 = vmatpush1.msra.mxu0 %v92
    %575 = vmatprep.subr.mxu0 0.0
    %576 = vmatpush1.msra.mxu0 0.0
    %577 = vmatprep.subr.mxu0 0.0
    %578 = vmatpush1.msra.mxu0 0.0
    %579 = vmatprep.subr.mxu0 0.0
    %580 = vmatpush1.msra.mxu0 0.0
    %581 = vmatprep.subr.mxu0 0.0
    %582 = vmatpush1.msra.mxu0 0.0
    %583 = vmatprep.subr.mxu0 0.0
    %584 = vmatpush1.msra.mxu0 0.0
    %585 = vmatprep.subr.mxu0 0.0
    %586 = vmatpush1.msra.mxu0 0.0
    %587 = vmatprep.subr.mxu0 0.0
    %588 = vmatpush1.msra.mxu0 0.0
    %589 = vmatprep.subr.mxu0 0.0
    %590 = vmatpush1.msra.mxu0 0.0
    %591 = vmatprep.subr.mxu0 0.0
    %592 = vmatpush1.msra.mxu0 0.0
    %593 = vmatprep.subr.mxu0 0.0
    %594 = vmatpush1.msra.mxu0 0.0
    %595 = vmatprep.subr.mxu0 0.0
    %596 = vmatpush1.msra.mxu0 0.0
    %597 = vmatprep.subr.mxu0 0.0
    %598 = vmatpush1.msra.mxu0 0.0
    %599 = vmatprep.subr.mxu0 0.0
    %600 = vmatpush1.msra.mxu0 0.0
    %601 = vmatprep.subr.mxu0 0.0
    %602 = vmatpush1.msra.mxu0 0.0
    %603 = vmatprep.subr.mxu0 0.0
    %604 = vmatpush1.msra.mxu0 0.0
    %605 = vmatprep.subr.mxu0 0.0
    %606 = vmatpush1.msra.mxu0 0.0
    %607 = vmatprep.subr.mxu0 0.0
    %608 = vmatpush1.msra.mxu0 0.0
    %609 = vmatprep.subr.mxu0 0.0
    %610 = vmatpush1.msra.mxu0 0.0
    %611 = vmatprep.subr.mxu0 0.0
    %612 = vmatpush1.msra.mxu0 0.0
    %613 = vmatprep.subr.mxu0 0.0
    %614 = vmatpush1.msra.mxu0 0.0
    %615 = vmatprep.subr.mxu0 0.0
    %616 = vmatpush1.msra.mxu0 0.0
    %617 = vmatprep.subr.mxu0 0.0
    %618 = vmatpush1.msra.mxu0 0.0
    %619 = vmatprep.subr.mxu0 0.0
    %620 = vmatpush1.msra.mxu0 0.0
    %621 = vmatprep.subr.mxu0 0.0
    %622 = vmatpush1.msra.mxu0 0.0
    %623 = vmatprep.subr.mxu0 0.0
    %624 = vmatpush1.msra.mxu0 0.0
    %625 = vmatprep.subr.mxu0 0.0
    %626 = vmatpush1.msra.mxu0 0.0
    %627 = vmatprep.subr.mxu0 0.0
    %628 = vmatpush1.msra.mxu0 0.0
    %629 = vmatprep.mubr.f32.mxu0 0.0
    %630 = vmatmul.mubr.f32.gmra.mrb[0].mxu0 %v98
    %v631 = vpop.f32.mrb[0].mxu0
    %v632 = vadd.f32 0.0, %v631
    %v633 = vpop.f32.mrb[0].mxu0
    %v634 = vadd.f32 0.0, %v633
    %635 = vmatprep.mubr.f32.mxu0 0.0
    %636 = vmatmul.mubr.f32.gmra.mrb[0].mxu0 %v101
    %v637 = vpop.f32.mrb[0].mxu0
    %v638 = vadd.f32 0.0, %v637
    %v639 = vpop.f32.mrb[0].mxu0
    %v640 = vadd.f32 0.0, %v639
    %641 = vdwg.mxu0
    %642 = vmatprep.subr.mxu0 %v31
    %643 = vmatpush1.msra.mxu0 %v30
    %644 = vmatprep.subr.mxu0 %v47
    %645 = vmatpush1.msra.mxu0 %v46
    %646 = vmatprep.subr.mxu0 %v63
    %647 = vmatpush1.msra.mxu0 %v62
    %648 = vmatprep.subr.mxu0 %v79
    %649 = vmatpush1.msra.mxu0 %v78
    %650 = vmatprep.subr.mxu0 %v95
    %651 = vmatpush1.msra.mxu0 %v94
    %652 = vmatprep.subr.mxu0 0.0
    %653 = vmatpush1.msra.mxu0 0.0
    %654 = vmatprep.subr.mxu0 0.0
    %655 = vmatpush1.msra.mxu0 0.0
    %656 = vmatprep.subr.mxu0 0.0
    %657 = vmatpush1.msra.mxu0 0.0
    %658 = vmatprep.subr.mxu0 0.0
    %659 = vmatpush1.msra.mxu0 0.0
    %660 = vmatprep.subr.mxu0 0.0
    %661 = vmatpush1.msra.mxu0 0.0
    %662 = vmatprep.subr.mxu0 0.0
    %663 = vmatpush1.msra.mxu0 0.0
    %664 = vmatprep.subr.mxu0 0.0
    %665 = vmatpush1.msra.mxu0 0.0
    %666 = vmatprep.subr.mxu0 0.0
    %667 = vmatpush1.msra.mxu0 0.0
    %668 = vmatprep.subr.mxu0 0.0
    %669 = vmatpush1.msra.mxu0 0.0
    %670 = vmatprep.subr.mxu0 0.0
    %671 = vmatpush1.msra.mxu0 0.0
    %672 = vmatprep.subr.mxu0 0.0
    %673 = vmatpush1.msra.mxu0 0.0
    %674 = vmatprep.subr.mxu0 0.0
    %675 = vmatpush1.msra.mxu0 0.0
    %676 = vmatprep.subr.mxu0 0.0
    %677 = vmatpush1.msra.mxu0 0.0
    %678 = vmatprep.subr.mxu0 0.0
    %679 = vmatpush1.msra.mxu0 0.0
    %680 = vmatprep.subr.mxu0 0.0
    %681 = vmatpush1.msra.mxu0 0.0
    %682 = vmatprep.subr.mxu0 0.0
    %683 = vmatpush1.msra.mxu0 0.0
    %684 = vmatprep.subr.mxu0 0.0
    %685 = vmatpush1.msra.mxu0 0.0
    %686 = vmatprep.subr.mxu0 0.0
    %687 = vmatpush1.msra.mxu0 0.0
    %688 = vmatprep.subr.mxu0 0.0
    %689 = vmatpush1.msra.mxu0 0.0
    %690 = vmatprep.subr.mxu0 0.0
    %691 = vmatpush1.msra.mxu0 0.0
    %692 = vmatprep.subr.mxu0 0.0
    %693 = vmatpush1.msra.mxu0 0.0
    %694 = vmatprep.subr.mxu0 0.0
    %695 = vmatpush1.msra.mxu0 0.0
    %696 = vmatprep.subr.mxu0 0.0
    %697 = vmatpush1.msra.mxu0 0.0
    %698 = vmatprep.subr.mxu0 0.0
    %699 = vmatpush1.msra.mxu0 0.0
    %700 = vmatprep.subr.mxu0 0.0
    %701 = vmatpush1.msra.mxu0 0.0
    %702 = vmatprep.subr.mxu0 0.0
    %703 = vmatpush1.msra.mxu0 0.0
    %704 = vmatprep.subr.mxu0 0.0
    %705 = vmatpush1.msra.mxu0 0.0
    %706 = vmatprep.mubr.f32.mxu0 0.0
    %707 = vmatmul.mubr.f32.gmra.mrb[0].mxu0 %v98
    %v708 = vpop.f32.mrb[0].mxu0
    %v709 = vadd.f32 0.0, %v708
    %v710 = vpop.f32.mrb[0].mxu0
    %v711 = vadd.f32 0.0, %v710
    %712 = vmatprep.mubr.f32.mxu0 0.0
    %713 = vmatmul.mubr.f32.gmra.mrb[0].mxu0 %v101
    %v714 = vpop.f32.mrb[0].mxu0
    %v715 = vadd.f32 0.0, %v714
    %v716 = vpop.f32.mrb[0].mxu0
    %v717 = vadd.f32 0.0, %v716
    %718 = vdwg.mxu0
    %vm719 = vcmp.gt.f32.partialorder %v170, 20.0
    %vm720 = vcmp.gt.f32.partialorder %v172, 20.0
    %vm721 = vcmp.gt.f32.partialorder %v176, 20.0
    %vm722 = vcmp.gt.f32.partialorder %v178, 20.0
    %v723 = vsel %vm719, 1, 0
    %v724 = vsel %vm720, 1, 0
    %v725 = vsel %vm721, 1, 0
    %v726 = vsel %vm722, 1, 0
    %v727 = vcvt.s32.f32 %v723
    %v728 = vcvt.s32.f32 %v724
    %v729 = vcvt.s32.f32 %v725
    %v730 = vcvt.s32.f32 %v726
    %v731 = vmul.f32 %v170, %v727
    %v732 = vmul.f32 %v172, %v728
    %v733 = vmul.f32 %v176, %v729
    %v734 = vmul.f32 %v178, %v730
    %735 = vst [vmem:[%s2] sm:$0xff] %v731
    %736 = vst [vmem:[%s2 + $0x8] sm:$0xff] %v732
    %737 = vst [vmem:[%s2 + $0x10] sm:$0xff] %v733
    %738 = vst [vmem:[%s2 + $0x18] sm:$0xff] %v734
    %vm739 = vcmp.eq.f32.partialorder 0.0, 0.0
    %vm740 = vmand %vm719, %vm739
    %vm741 = vmand %vm720, %vm739
    %vm742 = vmand %vm721, %vm739
    %vm743 = vmand %vm722, %vm739
    %v744 = vsel %vm740, %v170, 0.0
    %v745 = vsel %vm741, %v172, 0.0
    %v746 = vsel %vm742, %v176, 0.0
    %v747 = vsel %vm743, %v178, 0.0
    %v748 = vadd.f32 %v727, 0.0
    %v749 = vadd.f32 %v728, 0.0
    %v750 = vadd.f32 %v729, 0.0
    %v751 = vadd.f32 %v730, 0.0
    %vm752 = vcmp.gt.f32.partialorder %v247, 20.0
    %vm753 = vcmp.gt.f32.partialorder %v249, 20.0
    %vm754 = vcmp.gt.f32.partialorder %v253, 20.0
    %vm755 = vcmp.gt.f32.partialorder %v255, 20.0
    %v756 = vsel %vm752, 1, 0
    %v757 = vsel %vm753, 1, 0
    %v758 = vsel %vm754, 1, 0
    %v759 = vsel %vm755, 1, 0
    %v760 = vcvt.s32.f32 %v756
    %v761 = vcvt.s32.f32 %v757
    %v762 = vcvt.s32.f32 %v758
    %v763 = vcvt.s32.f32 %v759
    %v764 = vmul.f32 %v247, %v760
    %v765 = vmul.f32 %v249, %v761
    %v766 = vmul.f32 %v253, %v762
    %v767 = vmul.f32 %v255, %v763
    %768 = vst [vmem:[%s2 + $0x20] sm:$0xff] %v764
    %769 = vst [vmem:[%s2 + $0x28] sm:$0xff] %v765
    %770 = vst [vmem:[%s2 + $0x30] sm:$0xff] %v766
    %771 = vst [vmem:[%s2 + $0x38] sm:$0xff] %v767
    %vm772 = vcmp.eq.f32.partialorder %v748, 0.0
    %vm773 = vcmp.eq.f32.partialorder %v749, 0.0
    %vm774 = vcmp.eq.f32.partialorder %v750, 0.0
    %vm775 = vcmp.eq.f32.partialorder %v751, 0.0
    %vm776 = vmand %vm752, %vm772
    %vm777 = vmand %vm753, %vm773
    %vm778 = vmand %vm754, %vm774
    %vm779 = vmand %vm755, %vm775
    %v780 = vsel %vm776, %v247, %v744
    %v781 = vsel %vm777, %v249, %v745
    %v782 = vsel %vm778, %v253, %v746
    %v783 = vsel %vm779, %v255, %v747
    %v784 = vadd.f32 %v748, %v760
    %v785 = vadd.f32 %v749, %v761
    %v786 = vadd.f32 %v750, %v762
    %v787 = vadd.f32 %v751, %v763
    %vm788 = vcmp.gt.f32.partialorder %v324, 20.0
    %vm789 = vcmp.gt.f32.partialorder %v326, 20.0
    %vm790 = vcmp.gt.f32.partialorder %v330, 20.0
    %vm791 = vcmp.gt.f32.partialorder %v332, 20.0
    %v792 = vsel %vm788, 1, 0
    %v793 = vsel %vm789, 1, 0
    %v794 = vsel %vm790, 1, 0
    %v795 = vsel %vm791, 1, 0
    %v796 = vcvt.s32.f32 %v792
    %v797 = vcvt.s32.f32 %v793
    %v798 = vcvt.s32.f32 %v794
    %v799 = vcvt.s32.f32 %v795
    %v800 = vmul.f32 %v324, %v796
    %v801 = vmul.f32 %v326, %v797
    %v802 = vmul.f32 %v330, %v798
    %v803 = vmul.f32 %v332, %v799
    %804 = vst [vmem:[%s2 + $0x40] sm:$0xff] %v800
    %805 = vst [vmem:[%s2 + $0x48] sm:$0xff] %v801
    %806 = vst [vmem:[%s2 + $0x50] sm:$0xff] %v802
    %807 = vst [vmem:[%s2 + $0x58] sm:$0xff] %v803
    %vm808 = vcmp.eq.f32.partialorder %v784, 0.0
    %vm809 = vcmp.eq.f32.partialorder %v785, 0.0
    %vm810 = vcmp.eq.f32.partialorder %v786, 0.0
    %vm811 = vcmp.eq.f32.partialorder %v787, 0.0
    %vm812 = vmand %vm788, %vm808
    %vm813 = vmand %vm789, %vm809
    %vm814 = vmand %vm790, %vm810
    %vm815 = vmand %vm791, %vm811
    %v816 = vsel %vm812, %v324, %v780
    %v817 = vsel %vm813, %v326, %v781
    %v818 = vsel %vm814, %v330, %v782
    %v819 = vsel %vm815, %v332, %v783
    %v820 = vadd.f32 %v784, %v796
    %v821 = vadd.f32 %v785, %v797
    %v822 = vadd.f32 %v786, %v798
    %v823 = vadd.f32 %v787, %v799
    %vm824 = vcmp.gt.f32.partialorder %v401, 20.0
    %vm825 = vcmp.gt.f32.partialorder %v403, 20.0
    %vm826 = vcmp.gt.f32.partialorder %v407, 20.0
    %vm827 = vcmp.gt.f32.partialorder %v409, 20.0
    %v828 = vsel %vm824, 1, 0
    %v829 = vsel %vm825, 1, 0
    %v830 = vsel %vm826, 1, 0
    %v831 = vsel %vm827, 1, 0
    %v832 = vcvt.s32.f32 %v828
    %v833 = vcvt.s32.f32 %v829
    %v834 = vcvt.s32.f32 %v830
    %v835 = vcvt.s32.f32 %v831
    %v836 = vmul.f32 %v401, %v832
    %v837 = vmul.f32 %v403, %v833
    %v838 = vmul.f32 %v407, %v834
    %v839 = vmul.f32 %v409, %v835
    %840 = vst [vmem:[%s2 + $0x60] sm:$0xff] %v836
    %841 = vst [vmem:[%s2 + $0x68] sm:$0xff] %v837
    %842 = vst [vmem:[%s2 + $0x70] sm:$0xff] %v838
    %843 = vst [vmem:[%s2 + $0x78] sm:$0xff] %v839
    %vm844 = vcmp.eq.f32.partialorder %v820, 0.0
    %vm845 = vcmp.eq.f32.partialorder %v821, 0.0
    %vm846 = vcmp.eq.f32.partialorder %v822, 0.0
    %vm847 = vcmp.eq.f32.partialorder %v823, 0.0
    %vm848 = vmand %vm824, %vm844
    %vm849 = vmand %vm825, %vm845
    %vm850 = vmand %vm826, %vm846
    %vm851 = vmand %vm827, %vm847
    %v852 = vsel %vm848, %v401, %v816
    %v853 = vsel %vm849, %v403, %v817
    %v854 = vsel %vm850, %v407, %v818
    %v855 = vsel %vm851, %v409, %v819
    %v856 = vadd.f32 %v820, %v832
    %v857 = vadd.f32 %v821, %v833
    %v858 = vadd.f32 %v822, %v834
    %v859 = vadd.f32 %v823, %v835
    %vm860 = vcmp.gt.f32.partialorder %v478, 20.0
    %vm861 = vcmp.gt.f32.partialorder %v480, 20.0
    %vm862 = vcmp.gt.f32.partialorder %v484, 20.0
    %vm863 = vcmp.gt.f32.partialorder %v486, 20.0
    %v864 = vsel %vm860, 1, 0
    %v865 = vsel %vm861, 1, 0
    %v866 = vsel %vm862, 1, 0
    %v867 = vsel %vm863, 1, 0
    %v868 = vcvt.s32.f32 %v864
    %v869 = vcvt.s32.f32 %v865
    %v870 = vcvt.s32.f32 %v866
    %v871 = vcvt.s32.f32 %v867
    %v872 = vmul.f32 %v478, %v868
    %v873 = vmul.f32 %v480, %v869
    %v874 = vmul.f32 %v484, %v870
    %v875 = vmul.f32 %v486, %v871
    %876 = vst [vmem:[%s2 + $0x80] sm:$0xff] %v872
    %877 = vst [vmem:[%s2 + $0x88] sm:$0xff] %v873
    %878 = vst [vmem:[%s2 + $0x90] sm:$0xff] %v874
    %879 = vst [vmem:[%s2 + $0x98] sm:$0xff] %v875
    %vm880 = vcmp.eq.f32.partialorder %v856, 0.0
    %vm881 = vcmp.eq.f32.partialorder %v857, 0.0
    %vm882 = vcmp.eq.f32.partialorder %v858, 0.0
    %vm883 = vcmp.eq.f32.partialorder %v859, 0.0
    %vm884 = vmand %vm860, %vm880
    %vm885 = vmand %vm861, %vm881
    %vm886 = vmand %vm862, %vm882
    %vm887 = vmand %vm863, %vm883
    %v888 = vsel %vm884, %v478, %v852
    %v889 = vsel %vm885, %v480, %v853
    %v890 = vsel %vm886, %v484, %v854
    %v891 = vsel %vm887, %v486, %v855
    %v892 = vadd.f32 %v856, %v868
    %v893 = vadd.f32 %v857, %v869
    %v894 = vadd.f32 %v858, %v870
    %v895 = vadd.f32 %v859, %v871
    %vm896 = vcmp.gt.f32.partialorder %v555, 20.0
    %vm897 = vcmp.gt.f32.partialorder %v557, 20.0
    %vm898 = vcmp.gt.f32.partialorder %v561, 20.0
    %vm899 = vcmp.gt.f32.partialorder %v563, 20.0
    %v900 = vsel %vm896, 1, 0
    %v901 = vsel %vm897, 1, 0
    %v902 = vsel %vm898, 1, 0
    %v903 = vsel %vm899, 1, 0
    %v904 = vcvt.s32.f32 %v900
    %v905 = vcvt.s32.f32 %v901
    %v906 = vcvt.s32.f32 %v902
    %v907 = vcvt.s32.f32 %v903
    %v908 = vmul.f32 %v555, %v904
    %v909 = vmul.f32 %v557, %v905
    %v910 = vmul.f32 %v561, %v906
    %v911 = vmul.f32 %v563, %v907
    %912 = vst [vmem:[%s2 + $0xa0] sm:$0xff] %v908
    %913 = vst [vmem:[%s2 + $0xa8] sm:$0xff] %v909
    %914 = vst [vmem:[%s2 + $0xb0] sm:$0xff] %v910
    %915 = vst [vmem:[%s2 + $0xb8] sm:$0xff] %v911
    %vm916 = vcmp.eq.f32.partialorder %v892, 0.0
    %vm917 = vcmp.eq.f32.partialorder %v893, 0.0
    %vm918 = vcmp.eq.f32.partialorder %v894, 0.0
    %vm919 = vcmp.eq.f32.partialorder %v895, 0.0
    %vm920 = vmand %vm896, %vm916
    %vm921 = vmand %vm897, %vm917
    %vm922 = vmand %vm898, %vm918
    %vm923 = vmand %vm899, %vm919
    %v924 = vsel %vm920, %v555, %v888
    %v925 = vsel %vm921, %v557, %v889
    %v926 = vsel %vm922, %v561, %v890
    %v927 = vsel %vm923, %v563, %v891
    %v928 = vadd.f32 %v892, %v904
    %v929 = vadd.f32 %v893, %v905
    %v930 = vadd.f32 %v894, %v906
    %v931 = vadd.f32 %v895, %v907
    %vm932 = vcmp.gt.f32.partialorder %v632, 20.0
    %vm933 = vcmp.gt.f32.partialorder %v634, 20.0
    %vm934 = vcmp.gt.f32.partialorder %v638, 20.0
    %vm935 = vcmp.gt.f32.partialorder %v640, 20.0
    %v936 = vsel %vm932, 1, 0
    %v937 = vsel %vm933, 1, 0
    %v938 = vsel %vm934, 1, 0
    %v939 = vsel %vm935, 1, 0
    %v940 = vcvt.s32.f32 %v936
    %v941 = vcvt.s32.f32 %v937
    %v942 = vcvt.s32.f32 %v938
    %v943 = vcvt.s32.f32 %v939
    %v944 = vmul.f32 %v632, %v940
    %v945 = vmul.f32 %v634, %v941
    %v946 = vmul.f32 %v638, %v942
    %v947 = vmul.f32 %v640, %v943
    %948 = vst [vmem:[%s2 + $0xc0] sm:$0xff] %v944
    %949 = vst [vmem:[%s2 + $0xc8] sm:$0xff] %v945
    %950 = vst [vmem:[%s2 + $0xd0] sm:$0xff] %v946
    %951 = vst [vmem:[%s2 + $0xd8] sm:$0xff] %v947
    %vm952 = vcmp.eq.f32.partialorder %v928, 0.0
    %vm953 = vcmp.eq.f32.partialorder %v929, 0.0
    %vm954 = vcmp.eq.f32.partialorder %v930, 0.0
    %vm955 = vcmp.eq.f32.partialorder %v931, 0.0
    %vm956 = vmand %vm932, %vm952
    %vm957 = vmand %vm933, %vm953
    %vm958 = vmand %vm934, %vm954
    %vm959 = vmand %vm935, %vm955
    %v960 = vsel %vm956, %v632, %v924
    %v961 = vsel %vm957, %v634, %v925
    %v962 = vsel %vm958, %v638, %v926
    %v963 = vsel %vm959, %v640, %v927
    %v964 = vadd.f32 %v928, %v940
    %v965 = vadd.f32 %v929, %v941
    %v966 = vadd.f32 %v930, %v942
    %v967 = vadd.f32 %v931, %v943
    %vm968 = vcmp.gt.f32.partialorder %v709, 20.0
    %vm969 = vcmp.gt.f32.partialorder %v711, 20.0
    %vm970 = vcmp.gt.f32.partialorder %v715, 20.0
    %vm971 = vcmp.gt.f32.partialorder %v717, 20.0
    %v972 = vsel %vm968, 1, 0
    %v973 = vsel %vm969, 1, 0
    %v974 = vsel %vm970, 1, 0
    %v975 = vsel %vm971, 1, 0
    %v976 = vcvt.s32.f32 %v972
    %v977 = vcvt.s32.f32 %v973
    %v978 = vcvt.s32.f32 %v974
    %v979 = vcvt.s32.f32 %v975
    %v980 = vmul.f32 %v709, %v976
    %v981 = vmul.f32 %v711, %v977
    %v982 = vmul.f32 %v715, %v978
    %v983 = vmul.f32 %v717, %v979
    %984 = vst [vmem:[%s2 + $0xe0] sm:$0xff] %v980
    %985 = vst [vmem:[%s2 + $0xe8] sm:$0xff] %v981
    %986 = vst [vmem:[%s2 + $0xf0] sm:$0xff] %v982
    %987 = vst [vmem:[%s2 + $0xf8] sm:$0xff] %v983
    %vm988 = vcmp.eq.f32.partialorder %v964, 0.0
    %vm989 = vcmp.eq.f32.partialorder %v965, 0.0
    %vm990 = vcmp.eq.f32.partialorder %v966, 0.0
    %vm991 = vcmp.eq.f32.partialorder %v967, 0.0
    %vm992 = vmand %vm968, %vm988
    %vm993 = vmand %vm969, %vm989
    %vm994 = vmand %vm970, %vm990
    %vm995 = vmand %vm971, %vm991
    %v996 = vsel %vm992, %v709, %v960
    %v997 = vsel %vm993, %v711, %v961
    %v998 = vsel %vm994, %v715, %v962
    %v999 = vsel %vm995, %v717, %v963
    %v1000 = vadd.f32 %v964, %v976
    %v1001 = vadd.f32 %v965, %v977
    %v1002 = vadd.f32 %v966, %v978
    %v1003 = vadd.f32 %v967, %v979
    %v1004 = vmax.f32 %v996, %v997
    %v1005 = vmax.f32 %v998, %v999
    %v1006 = vmax.f32 %v1004, %v1005
    %1007 = vmax.xlane.f32.xlu0 %v1006
    %v1008 = vpop.xlane.xlu0 %1007
    %v1009 = vrot.slane %v1008, 4
    %v1010 = vmax.f32 %v1008, %v1009
    %v1011 = vrot.slane %v1010, 2
    %v1012 = vmax.f32 %v1010, %v1011
    %v1013 = vrot.slane %v1012, 1
    %v1014 = vmax.f32 %v1012, %v1013
    %s1015 = vtos %v1014
    %s1016 = smul.f32 %s1015, 8.0
    %v1017 = vstv %s1016
    %v1018 = vadd.f32 %v996, %v1017
    %v1019 = vadd.f32 %v997, %v1017
    %v1020 = vadd.f32 %v998, %v1017
    %v1021 = vadd.f32 %v999, %v1017
    %v1022 = vmul.f32 %v1000, %v1018
    %v1023 = vmul.f32 %v1001, %v1019
    %v1024 = vmul.f32 %v1002, %v1020
    %v1025 = vmul.f32 %v1003, %v1021
    %v1026 = vmax.f32 %v1022, %v1023
    %1027 = vmax.xlane.f32.xlu0 %v1026
    %v1028 = vpop.xlane.xlu0 %1027
    %v1029 = vmax.f32 %v1024, %v1025
    %1030 = vmax.xlane.f32.xlu0 %v1029
    %v1031 = vpop.xlane.xlu0 %1030
    %v1032 = vmax.f32 %v1028, %v1031
    %v1033 = vrot.slane %v1032, 4
    %v1034 = vmax.f32 %v1032, %v1033
    %v1035 = vrot.slane %v1034, 2
    %v1036 = vmax.f32 %v1034, %v1035
    %v1037 = vrot.slane %v1036, 1
    %v1038 = vmax.f32 %v1036, %v1037
    %s1039 = vtos %v1038
    %v1040 = vlaneseq
    %v1041 = vshrl.u32 %v1040, 7
    %v1042 = vadd.s32 %v1041, 8
    %vm1043 = vcmp.ge.s32.totalorder %v1041, 5
    %vm1044 = vcmp.ge.s32.totalorder %v1042, 5
    %v1045 = vsel %vm1043, 1, 0
    %v1046 = vsel %vm1044, 1, 0
    %v1047 = vcvt.s32.f32 %v1045
    %v1048 = vcvt.s32.f32 %v1046
    %v1049 = vadd.f32 %v1047, 0.0
    %v1050 = vadd.f32 %v1048, 0.0
    %vm1051 = vcmp.ge.s32.totalorder %v1041, 10
    %vm1052 = vcmp.ge.s32.totalorder %v1042, 10
    %v1053 = vsel %vm1051, 1, 0
    %v1054 = vsel %vm1052, 1, 0
    %v1055 = vcvt.s32.f32 %v1053
    %v1056 = vcvt.s32.f32 %v1054
    %v1057 = vadd.f32 %v1049, %v1055
    %v1058 = vadd.f32 %v1050, %v1056
    %vm1059 = vcmp.lt.s32.totalorder %v1041, 15
    %vm1060 = vcmp.lt.s32.totalorder %v1042, 15
    %v1061 = vsel %vm1059, %v1057, 1e+30
    %v1062 = vsel %vm1060, %v1058, 1e+30
    %v1063 = vstv %s1039
    %vm1064 = vcmp.eq.f32.partialorder %v1028, %v1063
    %vm1065 = vcmp.eq.f32.partialorder %v1031, %v1063
    %v1066 = vsel %vm1064, %v1061, 1e+30
    %v1067 = vsel %vm1065, %v1062, 1e+30
    %v1068 = vmin.f32 %v1066, %v1067
    %v1069 = vrot.slane %v1068, 4
    %v1070 = vmin.f32 %v1068, %v1069
    %v1071 = vrot.slane %v1070, 2
    %v1072 = vmin.f32 %v1070, %v1071
    %v1073 = vrot.slane %v1072, 1
    %v1074 = vmin.f32 %v1072, %v1073
    %s1075 = vtos %v1074
    %p1076 = scmp.ne.f32.partialorder %s1039, 0.0
    %s1077 = scalar_select %p1076, %s1075, -1.0
    %s1078 = scvt.f32.s32.to.zero.pseudo %s1077
    %s1079 = scalar_lea.smem [#allocation2], 0
    %1080 = sst [smem:[%s1079]] %s1078
    // Predicated region
    $region10: #{snn_forward.1} parent=1 // pred_check
      _
    $region11: #{snn_forward.1} parent=1 // pred_check_branch
      %1082 = sbr.rel (0) target = $region13
    $region12: #{snn_forward.1} parent=1 // pred_region
      _
    $region13: #{snn_forward.1} parent=1 // pred_fallthru
      _
    // Predicated region
    $region14: #{snn_forward.1} parent=1 // pred_check
      _
    $region15: #{snn_forward.1} parent=1 // pred_check_branch
      %1084 = sbr.rel (0) target = $region17
    $region16: #{snn_forward.1} parent=1 // pred_region
      %s1086 = ssub.s32 16, 16
      %1087 = vsyncadd [#allocation3], %s1086
      %1090 = dma.smem_to_hbm [#allocation2], 16, %s3, [#allocation3]
    $region17: #{snn_forward.1} parent=1 // pred_fallthru
      _
    // Predicated region
    $region18: #{snn_forward.1} parent=1 // pred_check
      _
    $region19: #{snn_forward.1} parent=1 // pred_check_branch
      %1092 = sbr.rel (0) target = $region21
    $region20: #{snn_forward.1} parent=1 // pred_region
      _
    $region21: #{snn_forward.1} parent=1 // pred_fallthru
      _
    // Predicated region
    $region22: #{snn_forward.1} parent=1 // pred_check
      _
    $region23: #{snn_forward.1} parent=1 // pred_check_branch
      %1094 = sbr.rel (0) target = $region25
    $region24: #{snn_forward.1} parent=1 // pred_region
      %1095 = dma.done [#allocation3], 16
    $region25: #{snn_forward.1} parent=1 // pred_fallthru
      _
    %1096 = sfence
    %1097 = vsyncpa [#allocation3], 1

</llo_original>
